<compile_context>
chip_gen: v5e
topology: v5e:2x2
jax: 0.10.0
libtpu: 0.0.40
codegen_flags: <defaults>
</compile_context>

<pallas_src>
import math

import numpy as np
import jax
import jax.numpy as jnp
from jax.experimental import pallas as pl
from jax.experimental.pallas import tpu as pltpu


def _hbm_copy_kernel(x_hbm_ref, o_hbm_ref, sem):
    # One whole-array HBM->HBM DMA: issue it, then block until it completes.
    copy = pltpu.make_async_copy(x_hbm_ref, o_hbm_ref, sem)
    copy.start()
    copy.wait()


def _materialized_identity(x):
    """Fresh-buffer copy of x via a single HBM->HBM DMA (no VMEM round-trip)."""
    total = int(math.prod(x.shape)) if x.shape else 1
    nbytes = total * jnp.dtype(x.dtype).itemsize
    return pl.pallas_call(
        _hbm_copy_kernel,
        out_shape=jax.ShapeDtypeStruct(x.shape, x.dtype),
        in_specs=[pl.BlockSpec(memory_space=pl.ANY)],
        out_specs=pl.BlockSpec(memory_space=pl.ANY),
        scratch_shapes=[pltpu.SemaphoreType.DMA],
        cost_estimate=pl.CostEstimate(
            flops=0, transcendentals=0, bytes_accessed=2 * nbytes),
    )(x)


class StripMaskPallas:
    """Pallas TPU port of models/team.py::StripMask (identity; mask dropped)."""

    def __call__(self, x, mask=None, materialize=False):
        del mask                        # StripMask discards the mask entirely.
        if not materialize:
            # Optimal path: an identity needs no kernel and no HBM traffic.
            return x
        if x.size == 0:
            return x                    # nothing to copy
        return _materialized_identity(x)


if __name__ == "__main__":
    key = jax.random.PRNGKey(0)
    k1, k2, k3, k4 = jax.random.split(key, 4)

    sm = StripMaskPallas()

    # Case 1: zero-copy identity path; mask present and correctly ignored.
    x1 = jax.random.normal(k1, (2, 8, 256), jnp.float32)
    mask1 = jax.random.uniform(k2, (2, 8)) > 0.3
    out1 = jax.block_until_ready(sm(x1, mask1))
    assert out1.shape == x1.shape and out1.dtype == x1.dtype
    np.testing.assert_array_equal(np.asarray(out1), np.asarray(x1))

    # Case 2: materialized Pallas HBM->HBM DMA copy (fresh output buffer).
    out2 = jax.block_until_ready(sm(x1, mask1, materialize=True))
    assert out2.shape == x1.shape and out2.dtype == x1.dtype
    np.testing.assert_array_equal(np.asarray(out2), np.asarray(x1))

    # Case 3: awkward shape (3, 5, 7), f32 — the DMA path has no (8,128) /
    # lane-density constraints, so no masked stores and no relayout risk.
    x3 = jax.random.normal(k3, (3, 5, 7), jnp.float32)
    out3 = jax.block_until_ready(sm(x3, materialize=True))
    assert out3.shape == x3.shape and out3.dtype == x3.dtype
    np.testing.assert_array_equal(np.asarray(out3), np.asarray(x3))

    # Case 4: bf16 input, materialized copy, mask ignored.
    x4 = jax.random.normal(k4, (2, 16, 128), jnp.float32).astype(jnp.bfloat16)
    out4 = jax.block_until_ready(sm(x4, mask=None, materialize=True))
    assert out4.shape == x4.shape and out4.dtype == x4.dtype
    np.testing.assert_array_equal(np.asarray(out4, dtype=np.float32),
                                  np.asarray(x4, dtype=np.float32))

    print("KERNEL_OK")
</pallas_src>

<mosaic_0001>
module attributes {stable_mosaic.version = 11 : i64} {
  func.func @_hbm_copy_kernel(%arg0: memref<2x8x256xf32, #tpu.memory_space<any>>, %arg1: memref<2x8x256xf32, #tpu.memory_space<any>>, %arg2: memref<!tpu.dma_semaphore, #tpu.memory_space<semaphore_mem>>) attributes {dimension_semantics = [], scalar_prefetch = 0 : i64, scratch_operands = 1 : i64, tpu.core_type = #tpu.core_type<tc>} {
    tpu.enqueue_dma source(%arg0 : memref<2x8x256xf32, #tpu.memory_space<any>>) target(%arg1 : memref<2x8x256xf32, #tpu.memory_space<any>>) target_semaphore(%arg2 : memref<!tpu.dma_semaphore, #tpu.memory_space<semaphore_mem>>)
    tpu.wait_dma2 semaphore(%arg2 : memref<!tpu.dma_semaphore, #tpu.memory_space<semaphore_mem>>) src(%arg0 : memref<2x8x256xf32, #tpu.memory_space<any>>) dst(%arg1 : memref<2x8x256xf32, #tpu.memory_space<any>>)
    return
  }
}

</mosaic_0001>

<llo_original>
// kernel: tpu_custom_call.1
$region0: #{tpu_custom_call.1}
  #allocation0 [shape = 'u32[]', space=smem, size = 0x4, offset = 0x4, fixed_abs, tag = 'smem constant byte address 0x4 - core index']
  #allocation1 [shape = 'u32[72,128]{1,0:T(1,128)}', space=vmem, size = 0x9000, scoped, tag = 'internal scratch']
  #allocation2 [shape = 's32[1]{0}', space=sflag, size = 0x4, scoped, tag = 'scratch operand']
  #allocation3 [shape = 's32[]', space=sflag, size = 0x4, offset = 0, fixed_abs, tag = 'sflag constant byte address 0x0 - dummy sync flag']
  #allocation4 [shape = 'u32[0]{0}', space=smem, size = 0, offset = 0, fixed_abs, tag = 'smem constant byte address 0x0 - null']
  %s0 = inlined_call_operand.hbm [shape: f32[2,8,256], index: 0, kind: input, shape index: {}]
  %s1 = inlined_call_operand.hbm [shape: f32[2,8,256], index: 1, kind: output, shape index: {}]
  %s2 = sld [smem:[#allocation0]]
  $region2: #{tpu_custom_call.1} parent=0
    _
  %s4 = ssub.s32 1, %s2
  %s5 = scalar_select 0, %s4, %s2
  %s7 = sshll.u32 1, 14
  %s8 = sxor.u32 4294967295, %s7
  %s10 = sshll.u32 %s0, 4
  %s11 = int_to_ptr.hbm [resolvable:$true] %s10
  %s12 = sshll.u32 %s1, 4
  %s13 = int_to_ptr.hbm [resolvable:$true] %s12
  %16 = dma.general %s11, 512, %s13, [#allocation2], [#allocation3], [#allocation4], 0, 0
  %s17 = smul.u32 8, 2
  %s18 = smul.u32 %s17, 1
  %s19 = smul.u32 %s18, 2
  %s20 = sshll.u32 %s19, 4
  %21 = dma.done [#allocation2], %s20
  %22 = vsyncmov [#allocation2]
  %s23 = vpop.sfrf %22
  %p24 = scmp.eq.s32.totalorder %s23, 0
  %p25 = pneg %p24
  %27 = shalt.err (%p25)

</llo_original>
